<compile_context>
chip_gen: v5e
topology: v5e:2x2
jax: 0.10.0
libtpu: 0.0.40
codegen_flags: <defaults>
</compile_context>

<pallas_src>
import functools

import jax
import jax.numpy as jnp
from jax.experimental import pallas as pl
from jax.experimental.pallas import tpu as pltpu

_LN_EPS = 1e-5                      # nn.LayerNorm default
_INV_SQRT2 = 0.7071067811865475


# ----------------------------- kernel bodies ------------------------------- #

def _layer_norm_f32(x, gamma, beta):
    x = x.astype(jnp.float32)
    mean = jnp.mean(x, axis=-1, keepdims=True)
    var = jnp.mean((x - mean) * (x - mean), axis=-1, keepdims=True)
    xn = (x - mean) * jax.lax.rsqrt(var + _LN_EPS)
    return xn * gamma.astype(jnp.float32) + beta.astype(jnp.float32)


def _gelu_exact(h):
    # nn.GELU() default (approximate='none') -> exact erf form.
    return 0.5 * h * (1.0 + jax.lax.erf(h * _INV_SQRT2))


def _ffn_resident_kernel(x_ref, g_ref, bt_ref, w1_ref, b1_ref, w2_ref, b2_ref,
                         o_ref, *, matmul_dtype):
    """Weight-resident path: full W1/W2 stay in VMEM; 1-D grid over token tiles."""
    xn = _layer_norm_f32(x_ref[...], g_ref[...], bt_ref[...])
    h = jnp.dot(xn.astype(matmul_dtype), w1_ref[...].astype(matmul_dtype),
                preferred_element_type=jnp.float32)
    h = _gelu_exact(h + b1_ref[...].astype(jnp.float32))
    # Dropout(p=0.0) is identity.
    y = jnp.dot(h.astype(matmul_dtype), w2_ref[...].astype(matmul_dtype),
                preferred_element_type=jnp.float32)
    o_ref[...] = (y + b2_ref[...].astype(jnp.float32)).astype(o_ref.dtype)


def _ffn_hidden_tiled_kernel(x_ref, g_ref, bt_ref, w1_ref, b1_ref, w2_ref,
                             b2_ref, o_ref, xn_ref, acc_ref, *, matmul_dtype):
    """Fallback for large weights: hidden dim streamed in chunks (last grid axis),
    f32 VMEM accumulator, LayerNorm computed once per token tile and cached."""
    k = pl.program_id(1)                  # top level only (never inside pl.when bodies)
    nk = pl.num_programs(1)

    @pl.when(k == 0)
    def _():
        xn_ref[...] = _layer_norm_f32(
            x_ref[...], g_ref[...], bt_ref[...]).astype(xn_ref.dtype)
        acc_ref[...] = jnp.zeros_like(acc_ref)

    h = jnp.dot(xn_ref[...].astype(matmul_dtype), w1_ref[...].astype(matmul_dtype),
                preferred_element_type=jnp.float32)
    h = _gelu_exact(h + b1_ref[...].astype(jnp.float32))
    acc_ref[...] += jnp.dot(h.astype(matmul_dtype), w2_ref[...].astype(matmul_dtype),
                            preferred_element_type=jnp.float32)

    @pl.when(k == nk - 1)
    def _():
        o_ref[...] = (acc_ref[...] + b2_ref[...].astype(jnp.float32)).astype(o_ref.dtype)


# ----------------------------- tiling helpers ------------------------------ #

def _round_up(x, m):
    return (x + m - 1) // m * m


def _bpe(dt):
    return jnp.dtype(dt).itemsize


def _device_kind():
    try:
        return jax.devices()[0].device_kind.lower()
    except Exception:
        return ""


def _generation_defaults():
    """(default token tile, TensorCores per chip, fallback VMEM capacity bytes)."""
    kind = _device_kind()
    if "v7" in kind:
        return 512, 2, 64 * 1024 * 1024     # 64 MiB VMEM per TC, 2 TCs
    if "v6" in kind:
        return 1024, 1, 128 * 1024 * 1024   # ridge ~650 FLOP/byte -> big tm
    if "v5e" in kind or "v5 lite" in kind or "v5lite" in kind:
        return 256, 1, 128 * 1024 * 1024    # ridge ~240 -> tm 256 is enough
    return 512, 1, 64 * 1024 * 1024         # unknown chip / interpret: conservative


def _vmem_capacity_bytes(fallback):
    try:
        cap = int(pltpu.get_tpu_info().vmem_capacity_bytes)
        if cap > 0:
            return cap
    except Exception:
        pass
    return fallback


def _est_resident_bytes(tm, dim, hidden, x_bpe, w_bpe):
    tiles = 2 * tm * dim * x_bpe * 2                       # x + out tiles (double-buffered)
    weights = 2 * (dim * hidden + hidden * dim) * w_bpe    # W1 + W2 (constant blocks)
    params = 2 * (3 * dim + hidden) * w_bpe                # gamma, beta, b1, b2
    inter = 2 * tm * hidden * 4 + 2 * tm * dim * 4         # GELU / LayerNorm f32 temporaries
    return tiles + weights + params + inter


def _est_tiled_bytes(tm, tk, dim, x_bpe, w_bpe, mm_bpe):
    tiles = 2 * tm * dim * x_bpe * 2
    weights = 2 * (dim * tk + tk * dim) * w_bpe            # W1/W2 chunks (double-buffered)
    params = 2 * (3 * dim + tk) * w_bpe
    scratch = tm * dim * mm_bpe + tm * dim * 4             # xn cache + f32 accumulator
    inter = 2 * tm * tk * 4                                # h + GELU f32 temporaries
    return tiles + weights + params + scratch + inter


def _hidden_tile_candidates(hidden, target):
    """Multiples of 128 that divide hidden (no ragged reduction blocks), descending."""
    cands = []
    t = (min(hidden, target) // 128) * 128
    while t >= 128:
        if hidden % t == 0:
            cands.append(t)
        t -= 128
    if not cands:
        cands = [hidden]
    return cands


# ------------------------------- entry point -------------------------------- #

def feed_forward(x, gamma, beta, w1, b1, w2, b2, *,
                 tm=None, tk_hidden=1024, matmul_dtype=None,
                 vmem_budget_bytes=None):
    """x: (B, N, dim). Weights stored (in, out): w1 (dim, hidden), w2 (hidden, dim)."""
    B, N, dim = x.shape
    hidden = w1.shape[1]
    tokens = B * N
    x2d = x.reshape(tokens, dim)

    if matmul_dtype is None:
        matmul_dtype = w1.dtype   # faithful default; pass jnp.bfloat16 for fast MXU path
    x_bpe, w_bpe, mm_bpe = _bpe(x.dtype), _bpe(w1.dtype), _bpe(matmul_dtype)

    tm_default, n_cores, cap_fallback = _generation_defaults()
    capacity = _vmem_capacity_bytes(cap_fallback)
    budget = vmem_budget_bytes or (3 * capacity) // 4

    if tm is None:
        tm = tm_default
    tm = max(8, _round_up(min(tm, _round_up(tokens, 8)), 8))   # multiple of 8 always
    if n_cores > 1:
        # Keep every TensorCore busy under the "parallel" token axis.
        tm = min(tm, max(8, _round_up(pl.cdiv(tokens, n_cores), 8)))

    # 1-row 2D views of the per-feature vectors (lane-major broadcast in kernel).
    g2, bt2 = gamma.reshape(1, dim), beta.reshape(1, dim)
    b1_2, b2_2 = b1.reshape(1, hidden), b2.reshape(1, dim)

    # ---------------- weight-resident fast path (no hidden grid axis) --------
    est_res = _est_resident_bytes(tm, dim, hidden, x_bpe, w_bpe)
    if est_res <= budget:
        grid = (pl.cdiv(tokens, tm),)
        vmem_limit = int(min(capacity, max(2 * est_res, 32 * 1024 * 1024)))
        kernel = functools.partial(_ffn_resident_kernel, matmul_dtype=matmul_dtype)
        out = pl.pallas_call(
            kernel,
            out_shape=jax.ShapeDtypeStruct((tokens, dim), x.dtype),
            grid_spec=pltpu.PrefetchScalarGridSpec(
                num_scalar_prefetch=0,
                grid=grid,
                in_specs=[
                    pl.BlockSpec((tm, dim), lambda i: (i, 0)),        # x tile
                    pl.BlockSpec((1, dim), lambda i: (0, 0)),         # gamma
                    pl.BlockSpec((1, dim), lambda i: (0, 0)),         # beta
                    pl.BlockSpec((dim, hidden), lambda i: (0, 0)),    # W1 (resident)
                    pl.BlockSpec((1, hidden), lambda i: (0, 0)),      # b1
                    pl.BlockSpec((hidden, dim), lambda i: (0, 0)),    # W2 (resident)
                    pl.BlockSpec((1, dim), lambda i: (0, 0)),         # b2
                ],
                out_specs=pl.BlockSpec((tm, dim), lambda i: (i, 0)),
            ),
            compiler_params=pltpu.CompilerParams(
                dimension_semantics=("parallel",),
                vmem_limit_bytes=vmem_limit,
            ),
        )(x2d, g2, bt2, w1, b1_2, w2, b2_2)
        return out.reshape(B, N, dim)

    # ---------------- hidden-tiled fallback (weights too big for VMEM) -------
    tk, tm_sel = None, tm
    while True:
        for cand in _hidden_tile_candidates(hidden, tk_hidden):
            if _est_tiled_bytes(tm_sel, cand, dim, x_bpe, w_bpe, mm_bpe) <= budget:
                tk = cand
                break
        if tk is not None or tm_sel <= 8:
            break
        tm_sel = max(8, _round_up(tm_sel // 2, 8))
    if tk is None:
        tk = _hidden_tile_candidates(hidden, tk_hidden)[-1]   # best effort
    tm = tm_sel

    est = _est_tiled_bytes(tm, tk, dim, x_bpe, w_bpe, mm_bpe)
    vmem_limit = int(min(capacity, max(2 * est, 32 * 1024 * 1024)))
    grid = (pl.cdiv(tokens, tm), hidden // tk)   # token axis parallel, hidden axis last

    kernel = functools.partial(_ffn_hidden_tiled_kernel, matmul_dtype=matmul_dtype)
    out = pl.pallas_call(
        kernel,
        out_shape=jax.ShapeDtypeStruct((tokens, dim), x.dtype),
        grid_spec=pltpu.PrefetchScalarGridSpec(
            num_scalar_prefetch=0,
            grid=grid,
            in_specs=[
                pl.BlockSpec((tm, dim), lambda i, k: (i, 0)),     # x tile
                pl.BlockSpec((1, dim), lambda i, k: (0, 0)),      # gamma
                pl.BlockSpec((1, dim), lambda i, k: (0, 0)),      # beta
                pl.BlockSpec((dim, tk), lambda i, k: (0, k)),     # W1 hidden-chunk
                pl.BlockSpec((1, tk), lambda i, k: (0, k)),       # b1 hidden-chunk
                pl.BlockSpec((tk, dim), lambda i, k: (k, 0)),     # W2 hidden-chunk
                pl.BlockSpec((1, dim), lambda i, k: (0, 0)),      # b2
            ],
            out_specs=pl.BlockSpec((tm, dim), lambda i, k: (i, 0)),
            scratch_shapes=[
                pltpu.VMEM((tm, dim), jnp.dtype(matmul_dtype)),   # cached LayerNorm output
                pltpu.VMEM((tm, dim), jnp.float32),               # f32 accumulator
            ],
        ),
        compiler_params=pltpu.CompilerParams(
            dimension_semantics=("parallel", "arbitrary"),
            vmem_limit_bytes=vmem_limit,
        ),
    )(x2d, g2, bt2, w1, b1_2, w2, b2_2)
    return out.reshape(B, N, dim)


# ------------------------------- reference ---------------------------------- #

def feed_forward_ref(x, gamma, beta, w1, b1, w2, b2):
    xf = x.astype(jnp.float32)
    mean = jnp.mean(xf, axis=-1, keepdims=True)
    var = jnp.mean((xf - mean) ** 2, axis=-1, keepdims=True)
    xn = ((xf - mean) * jax.lax.rsqrt(var + _LN_EPS)
          * gamma.astype(jnp.float32) + beta.astype(jnp.float32))
    h = xn @ w1.astype(jnp.float32) + b1.astype(jnp.float32)
    h = 0.5 * h * (1.0 + jax.lax.erf(h * _INV_SQRT2))
    return (h @ w2.astype(jnp.float32) + b2.astype(jnp.float32)).astype(x.dtype)


if __name__ == "__main__":
    key = jax.random.PRNGKey(0)
    B, N, dim, hidden = 2, 8, 32, 64
    ks = jax.random.split(key, 8)
    x = jax.random.normal(ks[0], (B, N, dim), dtype=jnp.float32)
    gamma = 1.0 + 0.1 * jax.random.normal(ks[1], (dim,), dtype=jnp.float32)
    beta = 0.1 * jax.random.normal(ks[2], (dim,), dtype=jnp.float32)
    # Linear weights stored (in, out) = transposed PyTorch (out, in).
    w1 = jax.random.normal(ks[3], (dim, hidden), dtype=jnp.float32) * 0.05
    b1 = jax.random.normal(ks[4], (hidden,), dtype=jnp.float32) * 0.01
    w2 = jax.random.normal(ks[5], (hidden, dim), dtype=jnp.float32) * 0.05
    b2 = jax.random.normal(ks[6], (dim,), dtype=jnp.float32) * 0.01

    # 1) float32, aligned token count (weight-resident fast path).
    y = jax.block_until_ready(feed_forward(x, gamma, beta, w1, b1, w2, b2))
    y_ref = feed_forward_ref(x, gamma, beta, w1, b1, w2, b2)
    assert y.shape == (B, N, dim)
    assert jnp.allclose(y, y_ref, atol=1e-4, rtol=1e-4), "f32 mismatch vs reference"

    # 2) Ragged last token block (2*9 tokens with tm=8): out-of-range rows are
    #    row-independent garbage and are dropped by the masked partial store.
    x3 = jax.random.normal(ks[7], (2, 9, dim), dtype=jnp.float32)
    y3 = jax.block_until_ready(feed_forward(x3, gamma, beta, w1, b1, w2, b2, tm=8))
    y3_ref = feed_forward_ref(x3, gamma, beta, w1, b1, w2, b2)
    assert jnp.allclose(y3, y3_ref, atol=1e-4, rtol=1e-4), "ragged mismatch vs reference"

    # 3) bf16 weights/activations -> bf16 operands on the MXU, f32 accumulation.
    to_bf16 = lambda a: a.astype(jnp.bfloat16)
    yb = jax.block_until_ready(feed_forward(
        to_bf16(x), to_bf16(gamma), to_bf16(beta),
        to_bf16(w1), to_bf16(b1), to_bf16(w2), to_bf16(b2)))
    yb_ref = feed_forward_ref(to_bf16(x), to_bf16(gamma), to_bf16(beta),
                              to_bf16(w1), to_bf16(b1), to_bf16(w2), to_bf16(b2))
    assert jnp.allclose(yb.astype(jnp.float32), yb_ref.astype(jnp.float32),
                        atol=5e-2, rtol=5e-2), "bf16 mismatch vs reference"

    print("KERNEL_OK")
</pallas_src>

<mosaic_0001>
module attributes {stable_mosaic.version = 11 : i64} {
  func.func @_ffn_resident_kernel(%arg0: i32, %arg1: memref<16x32xf32, #tpu.memory_space<vmem>>, %arg2: memref<1x32xf32, #tpu.memory_space<vmem>>, %arg3: memref<1x32xf32, #tpu.memory_space<vmem>>, %arg4: memref<32x64xf32, #tpu.memory_space<vmem>>, %arg5: memref<1x64xf32, #tpu.memory_space<vmem>>, %arg6: memref<64x32xf32, #tpu.memory_space<vmem>>, %arg7: memref<1x32xf32, #tpu.memory_space<vmem>>, %arg8: memref<16x32xf32, #tpu.memory_space<vmem>>) attributes {dimension_semantics = [#tpu.dimension_semantics<parallel>], iteration_bounds = array<i64: 1>, scalar_prefetch = 0 : i64, scratch_operands = 0 : i64, tpu.core_type = #tpu.core_type<tc>, window_params = [{transform_indices = @transform_0, window_bounds = array<i64: 16, 32>}, {pipeline_mode = #tpu.pipeline_mode<synchronous>, transform_indices = @transform_1, window_bounds = array<i64: 1, 32>}, {pipeline_mode = #tpu.pipeline_mode<synchronous>, transform_indices = @transform_2, window_bounds = array<i64: 1, 32>}, {pipeline_mode = #tpu.pipeline_mode<synchronous>, transform_indices = @transform_3, window_bounds = array<i64: 32, 64>}, {pipeline_mode = #tpu.pipeline_mode<synchronous>, transform_indices = @transform_4, window_bounds = array<i64: 1, 64>}, {pipeline_mode = #tpu.pipeline_mode<synchronous>, transform_indices = @transform_5, window_bounds = array<i64: 64, 32>}, {pipeline_mode = #tpu.pipeline_mode<synchronous>, transform_indices = @transform_6, window_bounds = array<i64: 1, 32>}, {transform_indices = @transform_7, window_bounds = array<i64: 16, 32>}]} {
    %c0 = arith.constant 0 : index
    %c0_0 = arith.constant 0 : index
    %0 = vector.load %arg1[%c0, %c0_0] : memref<16x32xf32, #tpu.memory_space<vmem>>, vector<16x32xf32>
    %c0_1 = arith.constant 0 : index
    %c0_2 = arith.constant 0 : index
    %1 = vector.load %arg2[%c0_1, %c0_2] : memref<1x32xf32, #tpu.memory_space<vmem>>, vector<1x32xf32>
    %c0_3 = arith.constant 0 : index
    %c0_4 = arith.constant 0 : index
    %2 = vector.load %arg3[%c0_3, %c0_4] : memref<1x32xf32, #tpu.memory_space<vmem>>, vector<1x32xf32>
    %cst = arith.constant dense<0.000000e+00> : vector<16xf32>
    %3 = vector.multi_reduction <add>, %0, %cst [1] : vector<16x32xf32> to vector<16xf32>
    %4 = vector.shape_cast %3 : vector<16xf32> to vector<16x1xf32>
    %cst_5 = arith.constant 3.200000e+01 : f32
    %5 = vector.broadcast %cst_5 : f32 to vector<16x1xf32>
    %6 = arith.divf %4, %5 : vector<16x1xf32>
    %7 = vector.broadcast %6 : vector<16x1xf32> to vector<16x32xf32>
    %8 = arith.subf %0, %7 : vector<16x32xf32>
    %9 = vector.broadcast %6 : vector<16x1xf32> to vector<16x32xf32>
    %10 = arith.subf %0, %9 : vector<16x32xf32>
    %11 = arith.mulf %8, %10 : vector<16x32xf32>
    %cst_6 = arith.constant dense<0.000000e+00> : vector<16xf32>
    %12 = vector.multi_reduction <add>, %11, %cst_6 [1] : vector<16x32xf32> to vector<16xf32>
    %13 = vector.shape_cast %12 : vector<16xf32> to vector<16x1xf32>
    %cst_7 = arith.constant 3.200000e+01 : f32
    %14 = vector.broadcast %cst_7 : f32 to vector<16x1xf32>
    %15 = arith.divf %13, %14 : vector<16x1xf32>
    %16 = vector.broadcast %6 : vector<16x1xf32> to vector<16x32xf32>
    %17 = arith.subf %0, %16 : vector<16x32xf32>
    %cst_8 = arith.constant 9.99999974E-6 : f32
    %18 = vector.broadcast %cst_8 : f32 to vector<16x1xf32>
    %19 = arith.addf %15, %18 : vector<16x1xf32>
    %20 = math.rsqrt %19 : vector<16x1xf32>
    %21 = vector.broadcast %20 : vector<16x1xf32> to vector<16x32xf32>
    %22 = arith.mulf %17, %21 : vector<16x32xf32>
    %23 = vector.broadcast %1 : vector<1x32xf32> to vector<16x32xf32>
    %24 = arith.mulf %22, %23 : vector<16x32xf32>
    %25 = vector.broadcast %2 : vector<1x32xf32> to vector<16x32xf32>
    %26 = arith.addf %24, %25 : vector<16x32xf32>
    %c0_9 = arith.constant 0 : index
    %c0_10 = arith.constant 0 : index
    %27 = vector.load %arg4[%c0_9, %c0_10] : memref<32x64xf32, #tpu.memory_space<vmem>>, vector<32x64xf32>
    %cst_11 = arith.constant dense<0.000000e+00> : vector<16x64xf32>
    %28 = tpu.matmul %26, %27, %cst_11 {dimension_numbers = #tpu.dot_dimension_numbers<[1], [0], [0], [1], [0, 0, 1, 1], [], []>} : vector<16x32xf32>, vector<32x64xf32>, vector<16x64xf32> -> vector<16x64xf32>
    %c0_12 = arith.constant 0 : index
    %c0_13 = arith.constant 0 : index
    %29 = vector.load %arg5[%c0_12, %c0_13] : memref<1x64xf32, #tpu.memory_space<vmem>>, vector<1x64xf32>
    %30 = vector.broadcast %29 : vector<1x64xf32> to vector<16x64xf32>
    %31 = arith.addf %28, %30 : vector<16x64xf32>
    %cst_14 = arith.constant 5.000000e-01 : f32
    %32 = vector.broadcast %cst_14 : f32 to vector<16x64xf32>
    %33 = arith.mulf %32, %31 : vector<16x64xf32>
    %cst_15 = arith.constant 0.707106769 : f32
    %34 = vector.broadcast %cst_15 : f32 to vector<16x64xf32>
    %35 = arith.mulf %31, %34 : vector<16x64xf32>
    %36 = math.erf %35 : vector<16x64xf32>
    %cst_16 = arith.constant 1.000000e+00 : f32
    %37 = vector.broadcast %cst_16 : f32 to vector<16x64xf32>
    %38 = arith.addf %37, %36 : vector<16x64xf32>
    %39 = arith.mulf %33, %38 : vector<16x64xf32>
    %c0_17 = arith.constant 0 : index
    %c0_18 = arith.constant 0 : index
    %40 = vector.load %arg6[%c0_17, %c0_18] : memref<64x32xf32, #tpu.memory_space<vmem>>, vector<64x32xf32>
    %cst_19 = arith.constant dense<0.000000e+00> : vector<16x32xf32>
    %41 = tpu.matmul %39, %40, %cst_19 {dimension_numbers = #tpu.dot_dimension_numbers<[1], [0], [0], [1], [0, 0, 1, 1], [], []>} : vector<16x64xf32>, vector<64x32xf32>, vector<16x32xf32> -> vector<16x32xf32>
    %c0_20 = arith.constant 0 : index
    %c0_21 = arith.constant 0 : index
    %42 = vector.load %arg7[%c0_20, %c0_21] : memref<1x32xf32, #tpu.memory_space<vmem>>, vector<1x32xf32>
    %43 = vector.broadcast %42 : vector<1x32xf32> to vector<16x32xf32>
    %44 = arith.addf %41, %43 : vector<16x32xf32>
    %c0_22 = arith.constant 0 : index
    %c0_23 = arith.constant 0 : index
    %45 = vector.load %arg8[%c0_22, %c0_23] : memref<16x32xf32, #tpu.memory_space<vmem>>, vector<16x32xf32>
    tpu.vector_store %arg8[%c0_22, %c0_23], %44 {strides = array<i32>} : memref<16x32xf32, #tpu.memory_space<vmem>>, vector<16x32xf32>,
    return
  }
  func.func @transform_0(%arg0: i32) -> (i32, i32) {
    %c0_i32 = arith.constant 0 : i32
    %c0_i32_0 = arith.constant 0 : i32
    return %arg0, %c0_i32 : i32, i32
  }
  func.func @transform_1(%arg0: i32) -> (i32, i32) {
    %c0_i32 = arith.constant 0 : i32
    %c0_i32_0 = arith.constant 0 : i32
    %c0_i32_1 = arith.constant 0 : i32
    return %c0_i32, %c0_i32_0 : i32, i32
  }
  func.func @transform_2(%arg0: i32) -> (i32, i32) {
    %c0_i32 = arith.constant 0 : i32
    %c0_i32_0 = arith.constant 0 : i32
    %c0_i32_1 = arith.constant 0 : i32
    return %c0_i32, %c0_i32_0 : i32, i32
  }
  func.func @transform_3(%arg0: i32) -> (i32, i32) {
    %c0_i32 = arith.constant 0 : i32
    %c0_i32_0 = arith.constant 0 : i32
    %c0_i32_1 = arith.constant 0 : i32
    return %c0_i32, %c0_i32_0 : i32, i32
  }
  func.func @transform_4(%arg0: i32) -> (i32, i32) {
    %c0_i32 = arith.constant 0 : i32
    %c0_i32_0 = arith.constant 0 : i32
    %c0_i32_1 = arith.constant 0 : i32
    return %c0_i32, %c0_i32_0 : i32, i32
  }
  func.func @transform_5(%arg0: i32) -> (i32, i32) {
    %c0_i32 = arith.constant 0 : i32
    %c0_i32_0 = arith.constant 0 : i32
    %c0_i32_1 = arith.constant 0 : i32
    return %c0_i32, %c0_i32_0 : i32, i32
  }
  func.func @transform_6(%arg0: i32) -> (i32, i32) {
    %c0_i32 = arith.constant 0 : i32
    %c0_i32_0 = arith.constant 0 : i32
    %c0_i32_1 = arith.constant 0 : i32
    return %c0_i32, %c0_i32_0 : i32, i32
  }
  func.func @transform_7(%arg0: i32) -> (i32, i32) {
    %c0_i32 = arith.constant 0 : i32
    %c0_i32_0 = arith.constant 0 : i32
    return %arg0, %c0_i32 : i32, i32
  }
}

</mosaic_0001>

<llo_original>
// kernel: tpu_custom_call.1
$region0: #{tpu_custom_call.1}
  #allocation0 [shape = 'u32[]', space=smem, size = 0x4, offset = 0x4, fixed_abs, tag = 'smem constant byte address 0x4 - core index']
  #allocation1 [shape = 'u32[72,128]{1,0:T(1,128)}', space=vmem, size = 0x9000, scoped, tag = 'internal scratch']
  %s0 = inlined_call_operand.vmem [shape: f32[16,32], index: 0, kind: input, shape index: {}]
  %s1 = inlined_call_operand.vmem [shape: f32[1,32], index: 1, kind: input, shape index: {}]
  %s2 = inlined_call_operand.vmem [shape: f32[1,32], index: 2, kind: input, shape index: {}]
  %s3 = inlined_call_operand.vmem [shape: f32[32,64], index: 3, kind: input, shape index: {}]
  %s4 = inlined_call_operand.vmem [shape: f32[1,64], index: 4, kind: input, shape index: {}]
  %s5 = inlined_call_operand.vmem [shape: f32[64,32], index: 5, kind: input, shape index: {}]
  %s6 = inlined_call_operand.vmem [shape: f32[1,32], index: 6, kind: input, shape index: {}]
  %s7 = inlined_call_operand.hbm [shape: f32[16,32], index: 7, kind: output, shape index: {}]
  %s8 = sld [smem:[#allocation0]]
  $region38: #{tpu_custom_call.1} parent=0
    _
  %s10 = ssub.s32 1, %s8
  %s11 = scalar_select 0, %s10, %s8
  $region1: #{tpu_custom_call.1} parent=0
    #allocation2 [shape = 'u8[8192]{0}', space=vmem, size = 0x2000, scoped, tag = 'output window, operand 0, single buffered']
    #allocation3 [shape = 's32[1]{0}', space=sflag, size = 0x4, scoped, tag = 'scoped memory for tpu_custom_call.1']
    %12 = vsyncpa [#allocation3], 0
    // Predicated region
    $region2: #{tpu_custom_call.1} parent=1 // pred_check
      _
    $region3: #{tpu_custom_call.1} parent=1 // pred_check_branch
      %14 = sbr.rel (0) target = $region5
    $region4: #{tpu_custom_call.1} parent=1 // pred_region
      _
    $region5: #{tpu_custom_call.1} parent=1 // pred_fallthru
      _
    // Predicated region
    $region6: #{tpu_custom_call.1} parent=1 // pred_check
      _
    $region7: #{tpu_custom_call.1} parent=1 // pred_check_branch
      %16 = sbr.rel (0) target = $region9
    $region8: #{tpu_custom_call.1} parent=1 // pred_region
      _
    $region9: #{tpu_custom_call.1} parent=1 // pred_fallthru
      _
    // Predicated region
    $region10: #{tpu_custom_call.1} parent=1 // pred_check
      _
    $region11: #{tpu_custom_call.1} parent=1 // pred_check_branch
      %18 = sbr.rel (0) target = $region13
    $region12: #{tpu_custom_call.1} parent=1 // pred_region
      _
    $region13: #{tpu_custom_call.1} parent=1 // pred_fallthru
      _
    // Predicated region
    $region14: #{tpu_custom_call.1} parent=1 // pred_check
      _
    $region15: #{tpu_custom_call.1} parent=1 // pred_check_branch
      %20 = sbr.rel (0) target = $region17
    $region16: #{tpu_custom_call.1} parent=1 // pred_region
      _
    $region17: #{tpu_custom_call.1} parent=1 // pred_fallthru
      _
    // Predicated region
    $region18: #{tpu_custom_call.1} parent=1 // pred_check
      _
    $region19: #{tpu_custom_call.1} parent=1 // pred_check_branch
      %22 = sbr.rel (0) target = $region21
    $region20: #{tpu_custom_call.1} parent=1 // pred_region
      _
    $region21: #{tpu_custom_call.1} parent=1 // pred_fallthru
      _
    // Predicated region
    $region22: #{tpu_custom_call.1} parent=1 // pred_check
      _
    $region23: #{tpu_custom_call.1} parent=1 // pred_check_branch
      %24 = sbr.rel (0) target = $region25
    $region24: #{tpu_custom_call.1} parent=1 // pred_region
      _
    $region25: #{tpu_custom_call.1} parent=1 // pred_fallthru
      _
    // Predicated region
    $region26: #{tpu_custom_call.1} parent=1 // pred_check
      _
    $region27: #{tpu_custom_call.1} parent=1 // pred_check_branch
      %26 = sbr.rel (0) target = $region29
    $region28: #{tpu_custom_call.1} parent=1 // pred_region
      _
    $region29: #{tpu_custom_call.1} parent=1 // pred_fallthru
      _
    %v27 = vld [vmem:[%s0] sm:$0xff]
    %v28 = vld [vmem:[%s0 + $0x8] sm:$0xff]
    %v29 = vld [vmem:[%s1] sm:$0x1]
    %v30 = vld [vmem:[%s2] sm:$0x1]
    %vm31 = vcmask 261120
    %v32 = vsel %vm31, %v27, 0.0
    %33 = vadd.xlane.f32.xlu0 %v32
    %v34 = vpop.xlane.xlu0 %33
    %v35 = vsel %vm31, %v28, 0.0
    %36 = vadd.xlane.f32.xlu0 %v35
    %v37 = vpop.xlane.xlu0 %36
    %v38 = vrcp.pop 32.0
    %v39 = vmul.f32 32.0, %v38
    %v40 = vsub.f32 1.0, %v39
    %v41 = vmul.f32 %v38, %v40
    %v42 = vadd.f32 %v38, %v41
    %vm43 = vweird.f32 %v38
    %v44 = vsel %vm43, %v38, %v42
    %v45 = vmul.f32 %v34, %v44
    %v46 = vmul.f32 %v37, %v44
    %v47 = vsub.f32 %v27, %v45
    %v48 = vsub.f32 %v28, %v46
    %v49 = vmul.f32 %v47, %v47
    %v50 = vmul.f32 %v48, %v48
    %v51 = vsel %vm31, %v49, 0.0
    %52 = vadd.xlane.f32.xlu0 %v51
    %v53 = vpop.xlane.xlu0 %52
    %v54 = vsel %vm31, %v50, 0.0
    %55 = vadd.xlane.f32.xlu0 %v54
    %v56 = vpop.xlane.xlu0 %55
    %v57 = vmul.f32 %v53, %v44
    %v58 = vmul.f32 %v56, %v44
    %v59 = vadd.f32 %v57, 1e-05
    %v60 = vadd.f32 %v58, 1e-05
    %v61 = vrsqrt.pop %v59
    %v62 = vmul.f32 %v61, %v59
    %v63 = vmul.f32 %v62, %v61
    %v64 = vmul.f32 0.5, %v63
    %v65 = vsub.f32 1.5, %v64
    %v66 = vmul.f32 %v61, %v65
    %vm67 = vweird.f32 %v59
    %vm68 = vweird.f32 %v61
    %vm69 = vmor %vm67, %vm68
    %v70 = vsel %vm69, %v61, %v66
    %v71 = vrsqrt.pop %v60
    %v72 = vmul.f32 %v71, %v60
    %v73 = vmul.f32 %v72, %v71
    %v74 = vmul.f32 0.5, %v73
    %v75 = vsub.f32 1.5, %v74
    %v76 = vmul.f32 %v71, %v75
    %vm77 = vweird.f32 %v60
    %vm78 = vweird.f32 %v71
    %vm79 = vmor %vm77, %vm78
    %v80 = vsel %vm79, %v71, %v76
    %v81 = vmul.f32 %v47, %v70
    %v82 = vmul.f32 %v48, %v80
    %v84 = vperm.slane %v29, 0
    %v86 = vmul.f32 %v81, %v84
    %v87 = vmul.f32 %v82, %v84
    %v89 = vperm.slane %v30, 0
    %v91 = vadd.f32 %v86, %v89
    %v92 = vadd.f32 %v87, %v89
    %v93 = vld [vmem:[%s3] sm:$0xff]
    %v94 = vld [vmem:[%s3 + $0x8] sm:$0xff]
    %v95 = vld [vmem:[%s3 + $0x10] sm:$0xff]
    %v96 = vld [vmem:[%s3 + $0x18] sm:$0xff]
    %v97 = vld [vmem:[%s4] sm:$0x1]
    %v99 = vperm.slane %v97, 0
    %v102 = vsel %vm31, %v91, 0
    %v105 = vsel %vm31, %v92, 0
    %107 = vmatpush.msra.mxu0 0.0
    %108 = vmatpush.msra.mxu0 0.0
    %109 = vmatpush.msra.mxu0 0.0
    %110 = vmatpush.msra.mxu0 0.0
    %111 = vmatpush.msra.mxu0 0.0
    %112 = vmatpush.msra.mxu0 0.0
    %113 = vmatpush.msra.mxu0 0.0
    %114 = vmatpush.msra.mxu0 0.0
    %115 = vmatpush.msra.mxu0 0.0
    %116 = vmatpush.msra.mxu0 0.0
    %117 = vmatpush.msra.mxu0 0.0
    %118 = vmatpush.msra.mxu0 0.0
    %119 = vmatpush.msra.mxu0 %v96
    %120 = vmatpush.msra.mxu0 %v95
    %121 = vmatpush.msra.mxu0 %v94
    %122 = vmatpush.msra.mxu0 %v93
    %123 = vmatmul.f32.gmra.mxu0 %v102
    %v124 = vpop.f32.mrf.mxu0
    %v125 = vadd.f32 %v99, %v124
    %126 = vmatmul.f32.gmra.mxu0 %v105
    %v127 = vpop.f32.mrf.mxu0
    %v128 = vadd.f32 %v99, %v127
    %129 = vdwg.mxu0
    %v130 = vmul.f32 %v125, 0.5
    %v131 = vmul.f32 %v128, 0.5
    %v132 = vmul.f32 %v125, 0.70710677
    %v133 = vmul.f32 %v128, 0.70710677
    %v134 = vmul.f32 %v132, %v132
    %v135 = vmin.f32 16.0, %v134
    %v136 = vmul.f32 %v135, 2.1237322e-06
    %v137 = vadd.f32 %v136, 0.00028619796
    %v138 = vmul.f32 %v135, %v137
    %v139 = vadd.f32 %v138, 0.0036580483
    %v140 = vmul.f32 %v135, %v139
    %v141 = vadd.f32 %v140, 0.05243302
    %v142 = vmul.f32 %v135, %v141
    %v143 = vadd.f32 %v142, 0.18741608
    %v144 = vmul.f32 %v135, %v143
    %v145 = vadd.f32 %v144, 1.1283791
    %v146 = vmul.f32 %v132, %v145
    %v147 = vmul.f32 %v135, 3.8918573e-05
    %v148 = vadd.f32 %v147, 0.001143296
    %v149 = vmul.f32 %v135, %v148
    %v150 = vadd.f32 %v149, 0.014752088
    %v151 = vmul.f32 %v135, %v150
    %v152 = vadd.f32 %v151, 0.112945676
    %v153 = vmul.f32 %v135, %v152
    %v154 = vadd.f32 %v153, 0.4994258
    %v155 = vmul.f32 %v135, %v154
    %v156 = vadd.f32 %v155, 1.0
    %v157 = vrcp.pop %v156
    %v158 = vmul.f32 %v156, %v157
    %v159 = vsub.f32 1.0, %v158
    %v160 = vmul.f32 %v157, %v159
    %v161 = vadd.f32 %v157, %v160
    %vm162 = vweird.f32 %v156
    %vm163 = vweird.f32 %v157
    %vm164 = vmor %vm162, %vm163
    %v165 = vsel %vm164, %v157, %v161
    %v166 = vand.u32 2147483647, %v156
    %vm167 = vcmp.eq.f32.partialorder %v166, 8.507059e+37
    %v168 = vand.u32 %v156, 2147483648
    %v169 = vor.u32 1.1754944e-38, %v168
    %v170 = vsel %vm167, %v169, %v165
    %v171 = vmul.f32 %v146, %v170
    %v172 = vmin.f32 %v171, 1.0
    %v173 = vmax.f32 %v172, -1.0
    %v174 = vmul.f32 %v133, %v133
    %v175 = vmin.f32 16.0, %v174
    %v176 = vmul.f32 %v175, 2.1237322e-06
    %v177 = vadd.f32 %v176, 0.00028619796
    %v178 = vmul.f32 %v175, %v177
    %v179 = vadd.f32 %v178, 0.0036580483
    %v180 = vmul.f32 %v175, %v179
    %v181 = vadd.f32 %v180, 0.05243302
    %v182 = vmul.f32 %v175, %v181
    %v183 = vadd.f32 %v182, 0.18741608
    %v184 = vmul.f32 %v175, %v183
    %v185 = vadd.f32 %v184, 1.1283791
    %v186 = vmul.f32 %v133, %v185
    %v187 = vmul.f32 %v175, 3.8918573e-05
    %v188 = vadd.f32 %v187, 0.001143296
    %v189 = vmul.f32 %v175, %v188
    %v190 = vadd.f32 %v189, 0.014752088
    %v191 = vmul.f32 %v175, %v190
    %v192 = vadd.f32 %v191, 0.112945676
    %v193 = vmul.f32 %v175, %v192
    %v194 = vadd.f32 %v193, 0.4994258
    %v195 = vmul.f32 %v175, %v194
    %v196 = vadd.f32 %v195, 1.0
    %v197 = vrcp.pop %v196
    %v198 = vmul.f32 %v196, %v197
    %v199 = vsub.f32 1.0, %v198
    %v200 = vmul.f32 %v197, %v199
    %v201 = vadd.f32 %v197, %v200
    %vm202 = vweird.f32 %v196
    %vm203 = vweird.f32 %v197
    %vm204 = vmor %vm202, %vm203
    %v205 = vsel %vm204, %v197, %v201
    %v206 = vand.u32 2147483647, %v196
    %vm207 = vcmp.eq.f32.partialorder %v206, 8.507059e+37
    %v208 = vand.u32 %v196, 2147483648
    %v209 = vor.u32 1.1754944e-38, %v208
    %v210 = vsel %vm207, %v209, %v205
    %v211 = vmul.f32 %v186, %v210
    %v212 = vmin.f32 %v211, 1.0
    %v213 = vmax.f32 %v212, -1.0
    %v214 = vadd.f32 %v173, 1.0
    %v215 = vadd.f32 %v213, 1.0
    %v216 = vmul.f32 %v130, %v214
    %v217 = vmul.f32 %v131, %v215
    %v218 = vld [vmem:[%s5] sm:$0xff]
    %v219 = vld [vmem:[%s5 + $0x8] sm:$0xff]
    %v220 = vld [vmem:[%s5 + $0x10] sm:$0xff]
    %v221 = vld [vmem:[%s5 + $0x18] sm:$0xff]
    %v222 = vld [vmem:[%s5 + $0x20] sm:$0xff]
    %v223 = vld [vmem:[%s5 + $0x28] sm:$0xff]
    %v224 = vld [vmem:[%s5 + $0x30] sm:$0xff]
    %v225 = vld [vmem:[%s5 + $0x38] sm:$0xff]
    %v226 = vld [vmem:[%s6] sm:$0x1]
    %v228 = vperm.slane %v226, 0
    %vm230 = vcmask 523264
    %v232 = vsel %vm230, %v216, 0
    %v235 = vsel %vm230, %v217, 0
    %237 = vmatpush.msra.mxu0 0.0
    %238 = vmatpush.msra.mxu0 0.0
    %239 = vmatpush.msra.mxu0 0.0
    %240 = vmatpush.msra.mxu0 0.0
    %241 = vmatpush.msra.mxu0 0.0
    %242 = vmatpush.msra.mxu0 0.0
    %243 = vmatpush.msra.mxu0 0.0
    %244 = vmatpush.msra.mxu0 0.0
    %245 = vmatpush.msra.mxu0 %v225
    %246 = vmatpush.msra.mxu0 %v224
    %247 = vmatpush.msra.mxu0 %v223
    %248 = vmatpush.msra.mxu0 %v222
    %249 = vmatpush.msra.mxu0 %v221
    %250 = vmatpush.msra.mxu0 %v220
    %251 = vmatpush.msra.mxu0 %v219
    %252 = vmatpush.msra.mxu0 %v218
    %253 = vmatmul.f32.gmra.mxu0 %v232
    %v254 = vpop.f32.mrf.mxu0
    %v255 = vadd.f32 %v228, %v254
    %256 = vmatmul.f32.gmra.mxu0 %v235
    %v257 = vpop.f32.mrf.mxu0
    %v258 = vadd.f32 %v228, %v257
    %259 = vdwg.mxu0
    %260 = vst.msk [vmem:[#allocation2] sm:$0xff] %vm31, %v255
    %261 = vst.msk [vmem:[#allocation2 + $0x8] sm:$0xff] %vm31, %v258
    // Predicated region
    $region30: #{tpu_custom_call.1} parent=1 // pred_check
      _
    $region31: #{tpu_custom_call.1} parent=1 // pred_check_branch
      %263 = sbr.rel (0) target = $region33
    $region32: #{tpu_custom_call.1} parent=1 // pred_region
      %265 = vsyncadd [#allocation3], 0
      %s266 = sshll.u32 [#allocation2], 4
      %s267 = int_to_ptr.vmem [resolvable:$true] %s266
      %s268 = sshll.u32 %s7, 4
      %s269 = int_to_ptr.hbm [resolvable:$true] %s268
      %274 = dma.vmem_to_hbm [thread:$0]  %s267, 256, %s269, [#allocation3], 128, 128, 8
    $region33: #{tpu_custom_call.1} parent=1 // pred_fallthru
      _
    // Predicated region
    $region34: #{tpu_custom_call.1} parent=1 // pred_check
      _
    $region35: #{tpu_custom_call.1} parent=1 // pred_check_branch
      %276 = sbr.rel (0) target = $region37
    $region36: #{tpu_custom_call.1} parent=1 // pred_region
      %278 = dma.done [#allocation3], 256
    $region37: #{tpu_custom_call.1} parent=1 // pred_fallthru
      _
    %279 = vsyncpa [#allocation3], 1

</llo_original>
